<compile_context>
chip_gen: v6e
topology: v6e:2x2x1
jax: 0.10.0
libtpu: 0.0.40
codegen_flags: <defaults>
</compile_context>

<pallas_src>
from functools import partial

import numpy as np
import jax
import jax.numpy as jnp
from jax.experimental import pallas as pl
from jax.experimental.pallas import tpu as pltpu


# ---------------------------------------------------------------------------
# Fused dual-codebook VQ kernel
# ---------------------------------------------------------------------------
def _dq2_kernel(f_ref, emb_ref, quant_ref, ind_ref, diff_ref, *, inv_count):
    """One row-tile of the dual-codebook vector quantizer.

    f_ref    : (tm, 2*dim)      concat([flatten_lr, flatten_hr], axis=1)
    emb_ref  : (2*dim, n_embed) concat([embed_lr, embed_hr], axis=0)
    quant_ref: (tm, 2*dim)      concat([quantize_lr, quantize_hr], axis=1)
    ind_ref  : (tm, 1)          argmin code index (int32)
    diff_ref : (2,) SMEM        [diff_hr, diff_lr] (mean, accumulated over tiles)
    """
    i = pl.program_id(0)

    @pl.when(i == 0)
    def _():
        diff_ref[0] = 0.0
        diff_ref[1] = 0.0

    f = f_ref[...]                                               # (tm, 2D) f32
    e = emb_ref[...]                                             # (2D, n)  f32

    # dist = ||f||^2 - 2 f @ e + ||e||^2  (joint lr+hr distance, matches the
    # PyTorch cat([flatten_lr, flatten_hr]) / cat([embed_lr, embed_hr]) path).
    f_norm = jnp.sum(f * f, axis=-1, keepdims=True)              # (tm, 1)
    e_norm = jnp.sum(e * e, axis=0, keepdims=True)               # (1, n)
    prod = jnp.dot(f, e, preferred_element_type=jnp.float32)     # (tm, n) MXU
    dist = f_norm - 2.0 * prod + e_norm

    n_emb = dist.shape[-1]
    col = jax.lax.broadcasted_iota(jnp.int32, dist.shape, 1)     # (tm, n)
    min_d = jnp.min(dist, axis=-1, keepdims=True)
    idx = jnp.min(jnp.where(dist == min_d, col, n_emb),
                  axis=-1, keepdims=True)                        # (tm, 1) i32
    ind_ref[...] = idx

    # Codebook lookup as a one-hot MXU matmul (no VMEM gather needed).
    onehot = (col == idx).astype(jnp.float32)                    # (tm, n)
    quant = jax.lax.dot_general(onehot, e, (((1,), (1,)), ((), ())),
                                preferred_element_type=jnp.float32)  # (tm, 2D)
    quant_ref[...] = quant.astype(quant_ref.dtype)

    # diff_* = mean((quantize_* - input_*)^2) over the lr / hr halves of lanes.
    d2 = (quant - f) ** 2
    half = f.shape[-1] // 2
    lane = jax.lax.broadcasted_iota(jnp.int32, d2.shape, 1)
    sum_lr = jnp.sum(jnp.where(lane < half, d2, 0.0))
    sum_hr = jnp.sum(jnp.where(lane >= half, d2, 0.0))
    diff_ref[0] += sum_hr
    diff_ref[1] += sum_lr

    @pl.when(i == pl.num_programs(0) - 1)
    def _():
        diff_ref[0] = diff_ref[0] * inv_count
        diff_ref[1] = diff_ref[1] * inv_count


def dual_quantize2_forward(input_hr, input_lr, embed_lr, embed_hr):
    """Dual_Quantize2.forward, forward_type='parallel', eval mode.

    input_hr / input_lr : (..., dim)
    embed_lr / embed_hr : (dim, n_embed)
    Returns (quantize_hr, quantize_lr, diff_hr, diff_lr, embed_ind, embed_ind).
    """
    dim, n_embed = embed_lr.shape
    lead = input_hr.shape[:-1]
    M = int(np.prod(lead))

    # Lane-dense slabs: (M, 2*dim) features, (2*dim, n_embed) joint codebook.
    f = jnp.concatenate([input_lr.reshape(M, dim),
                         input_hr.reshape(M, dim)], axis=1)
    emb = jnp.concatenate([embed_lr, embed_hr], axis=0)

    # Biggest row tile <= 512 that divides M; otherwise full M (full-dim block
    # satisfies the (8,128) rule).  Caps per-step VMEM for large M (v7x 64 MiB).
    tm = M
    for cand in (512, 256, 128, 64, 32, 16, 8):
        if M >= cand and M % cand == 0:
            tm = cand
            break
    grid = (M // tm,)

    quant, ind, diffs = pl.pallas_call(
        partial(_dq2_kernel, inv_count=1.0 / float(M * dim)),
        grid=grid,
        in_specs=[pl.BlockSpec((tm, 2 * dim), lambda i: (i, 0)),
                  pl.BlockSpec((2 * dim, n_embed), lambda i: (0, 0))],
        out_specs=[pl.BlockSpec((tm, 2 * dim), lambda i: (i, 0)),
                   pl.BlockSpec((tm, 1), lambda i: (i, 0)),
                   pl.BlockSpec((2,), lambda i: (0,),
                                memory_space=pltpu.SMEM)],
        out_shape=[jax.ShapeDtypeStruct((M, 2 * dim), input_hr.dtype),
                   jax.ShapeDtypeStruct((M, 1), jnp.int32),
                   jax.ShapeDtypeStruct((2,), jnp.float32)],
        compiler_params=pltpu.CompilerParams(
            # diff accumulates across row tiles -> reduction axis.
            dimension_semantics=("arbitrary",)),
    )(f, emb)

    quantize_lr = quant[:, :dim].reshape(input_lr.shape)
    quantize_hr = quant[:, dim:].reshape(input_hr.shape)
    embed_ind = ind.reshape(lead)
    diff_hr, diff_lr = diffs[0], diffs[1]
    # Straight-through: input + (quantize - input).detach() == quantize forward.
    return quantize_hr, quantize_lr, diff_hr, diff_lr, embed_ind, embed_ind

# TODO(synk): training-time EMA codebook update (code_book_opt=True), the
# rtn_embed_sort sorted-index path, the 'lr2hr'/'hr2lr' forward types and
# gram_loss() are out of scope for this eval-mode forward kernel.


# ---------------------------------------------------------------------------
# Plain-JAX reference (mirrors the PyTorch forward exactly) for verification
# ---------------------------------------------------------------------------
def _reference(input_hr, input_lr, embed_lr, embed_hr):
    dim, _ = embed_lr.shape
    lead = input_hr.shape[:-1]
    f_hr = input_hr.reshape(-1, dim)
    f_lr = input_lr.reshape(-1, dim)
    flatten = jnp.concatenate([f_lr, f_hr], axis=1)
    embed = jnp.concatenate([embed_lr, embed_hr], axis=0)
    dist = (jnp.sum(flatten ** 2, axis=1, keepdims=True)
            - 2.0 * (flatten @ embed)
            + jnp.sum(embed ** 2, axis=0, keepdims=True))
    ind = jnp.argmin(dist, axis=1)
    q_hr = embed_hr.T[ind].reshape(input_hr.shape)
    q_lr = embed_lr.T[ind].reshape(input_lr.shape)
    diff_hr = jnp.mean((q_hr - input_hr) ** 2)
    diff_lr = jnp.mean((q_lr - input_lr) ** 2)
    return q_hr, q_lr, diff_hr, diff_lr, ind.reshape(lead).astype(jnp.int32)


# ---------------------------------------------------------------------------
if __name__ == "__main__":
    # Small shapes consistent with the module: dim=64, n_embed=128,
    # inputs (B, H, W, dim) = (2, 8, 8, 64)  -> M = 128 tokens.
    B, H, W = 2, 8, 8
    dim, n_embed = 64, 128

    key = jax.random.PRNGKey(0)
    k_hr, k_lr, k_ehr, k_elr = jax.random.split(key, 4)
    input_hr = jax.random.normal(k_hr, (B, H, W, dim), jnp.float32)
    input_lr = jax.random.normal(k_lr, (B, H, W, dim), jnp.float32)
    # NOTE: the PyTorch buffer init (.uniform_(-1/n, -1/n)) is a degenerate
    # constant codebook; random codebooks are used so the demo exercises real
    # argmin behaviour.  Forward semantics do not depend on the init values.
    embed_hr = 0.5 * jax.random.normal(k_ehr, (dim, n_embed), jnp.float32)
    embed_lr = 0.5 * jax.random.normal(k_elr, (dim, n_embed), jnp.float32)

    out = dual_quantize2_forward(input_hr, input_lr, embed_lr, embed_hr)
    out = jax.block_until_ready(out)
    q_hr, q_lr, diff_hr, diff_lr, ind_a, ind_b = out

    assert q_hr.shape == (B, H, W, dim) and q_lr.shape == (B, H, W, dim)
    assert ind_a.shape == (B, H, W) and ind_a.dtype == jnp.int32
    assert bool(jnp.all((ind_a >= 0) & (ind_a < n_embed)))
    assert bool(jnp.all(jnp.isfinite(q_hr))) and bool(jnp.all(jnp.isfinite(q_lr)))
    assert bool(jnp.isfinite(diff_hr)) and bool(jnp.isfinite(diff_lr))

    r_hr, r_lr, r_dhr, r_dlr, r_ind = _reference(input_hr, input_lr,
                                                 embed_lr, embed_hr)
    assert bool(jnp.all(ind_a == r_ind))
    assert bool(jnp.all(ind_b == r_ind))
    assert bool(jnp.allclose(q_hr, r_hr, atol=1e-5, rtol=1e-5))
    assert bool(jnp.allclose(q_lr, r_lr, atol=1e-5, rtol=1e-5))
    assert bool(jnp.allclose(diff_hr, r_dhr, atol=1e-5, rtol=1e-5))
    assert bool(jnp.allclose(diff_lr, r_dlr, atol=1e-5, rtol=1e-5))

    print("KERNEL_OK")
</pallas_src>

<mosaic_0001>
module attributes {stable_mosaic.version = 11 : i64} {
  func.func @_dq2_kernel(%arg0: i32, %arg1: memref<128x128xf32, #tpu.memory_space<vmem>>, %arg2: memref<128x128xf32, #tpu.memory_space<vmem>>, %arg3: memref<128x128xf32, #tpu.memory_space<vmem>>, %arg4: memref<128x1xi32, #tpu.memory_space<vmem>>, %arg5: memref<2xf32, #tpu.memory_space<smem>>) attributes {dimension_semantics = [#tpu.dimension_semantics<arbitrary>], iteration_bounds = array<i64: 1>, scalar_prefetch = 0 : i64, scratch_operands = 0 : i64, tpu.core_type = #tpu.core_type<tc>, window_params = [{transform_indices = @transform_0, window_bounds = array<i64: 128, 128>}, {pipeline_mode = #tpu.pipeline_mode<synchronous>, transform_indices = @transform_1, window_bounds = array<i64: 128, 128>}, {transform_indices = @transform_2, window_bounds = array<i64: 128, 128>}, {transform_indices = @transform_3, window_bounds = array<i64: 128, 1>}, {transform_indices = @transform_4, window_bounds = array<i64: 2>}]} {
    %c0_i32 = arith.constant 0 : i32
    %0 = arith.cmpi eq, %arg0, %c0_i32 : i32
    %1 = arith.extui %0 : i1 to i32
    %c0_i32_0 = arith.constant 0 : i32
    %2 = arith.cmpi ne, %1, %c0_i32_0 : i32
    scf.if %2 {
      %cst_24 = arith.constant 0.000000e+00 : f32
      %c0_25 = arith.constant 0 : index
      %62 = memref.load %arg5[%c0_25] : memref<2xf32, #tpu.memory_space<smem>>
      memref.store %cst_24, %arg5[%c0_25] : memref<2xf32, #tpu.memory_space<smem>>
      %cst_26 = arith.constant 0.000000e+00 : f32
      %c1_27 = arith.constant 1 : index
      %63 = memref.load %arg5[%c1_27] : memref<2xf32, #tpu.memory_space<smem>>
      memref.store %cst_26, %arg5[%c1_27] : memref<2xf32, #tpu.memory_space<smem>>
    } else {
    }
    %c0 = arith.constant 0 : index
    %c0_1 = arith.constant 0 : index
    %3 = vector.load %arg1[%c0, %c0_1] : memref<128x128xf32, #tpu.memory_space<vmem>>, vector<128x128xf32>
    %c0_2 = arith.constant 0 : index
    %c0_3 = arith.constant 0 : index
    %4 = vector.load %arg2[%c0_2, %c0_3] : memref<128x128xf32, #tpu.memory_space<vmem>>, vector<128x128xf32>
    %5 = arith.mulf %3, %3 : vector<128x128xf32>
    %cst = arith.constant dense<0.000000e+00> : vector<128xf32>
    %6 = vector.multi_reduction <add>, %5, %cst [1] : vector<128x128xf32> to vector<128xf32>
    %7 = vector.shape_cast %6 : vector<128xf32> to vector<128x1xf32>
    %8 = arith.mulf %4, %4 : vector<128x128xf32>
    %cst_4 = arith.constant dense<0.000000e+00> : vector<128xf32>
    %9 = vector.multi_reduction <add>, %8, %cst_4 [0] : vector<128x128xf32> to vector<128xf32>
    %10 = vector.shape_cast %9 : vector<128xf32> to vector<1x128xf32>
    %cst_5 = arith.constant dense<0.000000e+00> : vector<128x128xf32>
    %11 = tpu.matmul %3, %4, %cst_5 {dimension_numbers = #tpu.dot_dimension_numbers<[1], [0], [0], [1], [0, 0, 1, 1], [], []>} : vector<128x128xf32>, vector<128x128xf32>, vector<128x128xf32> -> vector<128x128xf32>
    %cst_6 = arith.constant 2.000000e+00 : f32
    %12 = vector.broadcast %cst_6 : f32 to vector<128x128xf32>
    %13 = arith.mulf %12, %11 : vector<128x128xf32>
    %14 = vector.broadcast %7 : vector<128x1xf32> to vector<128x128xf32>
    %15 = arith.subf %14, %13 : vector<128x128xf32>
    %16 = vector.broadcast %10 : vector<1x128xf32> to vector<128x128xf32>
    %17 = arith.addf %15, %16 : vector<128x128xf32>
    %18 = tpu.iota {dimensions = array<i32: 1>} : vector<128x128xi32>
    %cst_7 = arith.constant dense<0x7F800000> : vector<128xf32>
    %19 = vector.multi_reduction <minimumf>, %17, %cst_7 [1] : vector<128x128xf32> to vector<128xf32>
    %20 = vector.shape_cast %19 : vector<128xf32> to vector<128x1xf32>
    %21 = vector.broadcast %20 : vector<128x1xf32> to vector<128x128xf32>
    %22 = arith.cmpf oeq, %17, %21 : vector<128x128xf32>
    %c128_i32 = arith.constant 128 : i32
    %23 = vector.broadcast %c128_i32 : i32 to vector<128x128xi32>
    %24 = arith.select %22, %18, %23 : vector<128x128xi1>, vector<128x128xi32>
    %cst_8 = arith.constant dense<2147483647> : vector<128xi32>
    %25 = vector.multi_reduction <minsi>, %24, %cst_8 [1] : vector<128x128xi32> to vector<128xi32>
    %26 = vector.shape_cast %25 : vector<128xi32> to vector<128x1xi32>
    %c0_9 = arith.constant 0 : index
    %c0_10 = arith.constant 0 : index
    %27 = vector.load %arg4[%c0_9, %c0_10] : memref<128x1xi32, #tpu.memory_space<vmem>>, vector<128x1xi32>
    tpu.vector_store %arg4[%c0_9, %c0_10], %26 {strides = array<i32>} : memref<128x1xi32, #tpu.memory_space<vmem>>, vector<128x1xi32>,
    %28 = vector.broadcast %26 : vector<128x1xi32> to vector<128x128xi32>
    %29 = arith.cmpi eq, %18, %28 : vector<128x128xi32>
    %30 = arith.extui %29 : vector<128x128xi1> to vector<128x128xi32>
    %31 = arith.sitofp %30 : vector<128x128xi32> to vector<128x128xf32>
    %cst_11 = arith.constant dense<0.000000e+00> : vector<128x128xf32>
    %32 = tpu.matmul %31, %4, %cst_11 {dimension_numbers = #tpu.dot_dimension_numbers<[1], [1], [0], [0], [0, 0, 1, 0], [], []>} : vector<128x128xf32>, vector<128x128xf32>, vector<128x128xf32> -> vector<128x128xf32>
    %c0_12 = arith.constant 0 : index
    %c0_13 = arith.constant 0 : index
    %33 = vector.load %arg3[%c0_12, %c0_13] : memref<128x128xf32, #tpu.memory_space<vmem>>, vector<128x128xf32>
    tpu.vector_store %arg3[%c0_12, %c0_13], %32 {strides = array<i32>} : memref<128x128xf32, #tpu.memory_space<vmem>>, vector<128x128xf32>,
    %34 = arith.subf %32, %3 : vector<128x128xf32>
    %35 = arith.mulf %34, %34 : vector<128x128xf32>
    %36 = tpu.iota {dimensions = array<i32: 1>} : vector<128x128xi32>
    %c64_i32 = arith.constant 64 : i32
    %37 = vector.broadcast %c64_i32 : i32 to vector<128x128xi32>
    %38 = arith.cmpi slt, %36, %37 : vector<128x128xi32>
    %cst_14 = arith.constant 0.000000e+00 : f32
    %39 = vector.broadcast %cst_14 : f32 to vector<128x128xf32>
    %40 = arith.select %38, %35, %39 : vector<128x128xi1>, vector<128x128xf32>
    %41 = vector.shape_cast %40 : vector<128x128xf32> to vector<1x128x128xf32>
    %cst_15 = arith.constant dense<0.000000e+00> : vector<1xf32>
    %42 = vector.multi_reduction <add>, %41, %cst_15 [1, 2] : vector<1x128x128xf32> to vector<1xf32>
    %43 = vector.shape_cast %42 : vector<1xf32> to vector<1x1x1xf32>
    %44 = vector.extract %43[0, 0, 0] : f32 from vector<1x1x1xf32>
    %c64_i32_16 = arith.constant 64 : i32
    %45 = vector.broadcast %c64_i32_16 : i32 to vector<128x128xi32>
    %46 = arith.cmpi sge, %36, %45 : vector<128x128xi32>
    %cst_17 = arith.constant 0.000000e+00 : f32
    %47 = vector.broadcast %cst_17 : f32 to vector<128x128xf32>
    %48 = arith.select %46, %35, %47 : vector<128x128xi1>, vector<128x128xf32>
    %49 = vector.shape_cast %48 : vector<128x128xf32> to vector<1x128x128xf32>
    %cst_18 = arith.constant dense<0.000000e+00> : vector<1xf32>
    %50 = vector.multi_reduction <add>, %49, %cst_18 [1, 2] : vector<1x128x128xf32> to vector<1xf32>
    %51 = vector.shape_cast %50 : vector<1xf32> to vector<1x1x1xf32>
    %52 = vector.extract %51[0, 0, 0] : f32 from vector<1x1x1xf32>
    %c0_19 = arith.constant 0 : index
    %53 = memref.load %arg5[%c0_19] : memref<2xf32, #tpu.memory_space<smem>>
    %54 = arith.addf %53, %52 : f32
    %c0_20 = arith.constant 0 : index
    %55 = memref.load %arg5[%c0_20] : memref<2xf32, #tpu.memory_space<smem>>
    memref.store %54, %arg5[%c0_20] : memref<2xf32, #tpu.memory_space<smem>>
    %c1 = arith.constant 1 : index
    %56 = memref.load %arg5[%c1] : memref<2xf32, #tpu.memory_space<smem>>
    %57 = arith.addf %56, %44 : f32
    %c1_21 = arith.constant 1 : index
    %58 = memref.load %arg5[%c1_21] : memref<2xf32, #tpu.memory_space<smem>>
    memref.store %57, %arg5[%c1_21] : memref<2xf32, #tpu.memory_space<smem>>
    %c0_i32_22 = arith.constant 0 : i32
    %59 = arith.cmpi eq, %arg0, %c0_i32_22 : i32
    %60 = arith.extui %59 : i1 to i32
    %c0_i32_23 = arith.constant 0 : i32
    %61 = arith.cmpi ne, %60, %c0_i32_23 : i32
    scf.if %61 {
      %c0_24 = arith.constant 0 : index
      %62 = memref.load %arg5[%c0_24] : memref<2xf32, #tpu.memory_space<smem>>
      %cst_25 = arith.constant 1.22070313E-4 : f32
      %63 = arith.mulf %62, %cst_25 : f32
      %c0_26 = arith.constant 0 : index
      %64 = memref.load %arg5[%c0_26] : memref<2xf32, #tpu.memory_space<smem>>
      memref.store %63, %arg5[%c0_26] : memref<2xf32, #tpu.memory_space<smem>>
      %c1_27 = arith.constant 1 : index
      %65 = memref.load %arg5[%c1_27] : memref<2xf32, #tpu.memory_space<smem>>
      %cst_28 = arith.constant 1.22070313E-4 : f32
      %66 = arith.mulf %65, %cst_28 : f32
      %c1_29 = arith.constant 1 : index
      %67 = memref.load %arg5[%c1_29] : memref<2xf32, #tpu.memory_space<smem>>
      memref.store %66, %arg5[%c1_29] : memref<2xf32, #tpu.memory_space<smem>>
    } else {
    }
    return
  }
  func.func @transform_0(%arg0: i32) -> (i32, i32) {
    %c0_i32 = arith.constant 0 : i32
    %c0_i32_0 = arith.constant 0 : i32
    return %arg0, %c0_i32 : i32, i32
  }
  func.func @transform_1(%arg0: i32) -> (i32, i32) {
    %c0_i32 = arith.constant 0 : i32
    %c0_i32_0 = arith.constant 0 : i32
    %c0_i32_1 = arith.constant 0 : i32
    return %c0_i32, %c0_i32_0 : i32, i32
  }
  func.func @transform_2(%arg0: i32) -> (i32, i32) {
    %c0_i32 = arith.constant 0 : i32
    %c0_i32_0 = arith.constant 0 : i32
    return %arg0, %c0_i32 : i32, i32
  }
  func.func @transform_3(%arg0: i32) -> (i32, i32) {
    %c0_i32 = arith.constant 0 : i32
    %c0_i32_0 = arith.constant 0 : i32
    return %arg0, %c0_i32 : i32, i32
  }
  func.func @transform_4(%arg0: i32) -> i32 {
    %c0_i32 = arith.constant 0 : i32
    %c0_i32_0 = arith.constant 0 : i32
    return %c0_i32 : i32
  }
}

</mosaic_0001>

<llo_original>
// kernel: tpu_custom_call.1
$region0: #{tpu_custom_call.1}
  #allocation0 [shape = 'u32[]', space=smem, size = 0x4, offset = 0x4, fixed_abs, tag = 'smem constant byte address 0x4 - core index']
  #allocation1 [shape = 'u32[144,128]{1,0:T(1,128)}', space=vmem, size = 0x12000, scoped, tag = 'internal scratch']
  %s0 = inlined_call_operand.hbm [shape: f32[128,128], index: 0, kind: input, shape index: {}]
  %s1 = inlined_call_operand.hbm [shape: f32[128,128], index: 1, kind: input, shape index: {}]
  %s2 = inlined_call_operand.hbm [shape: f32[128,128], index: 2, kind: output, shape index: {0}]
  %s3 = inlined_call_operand.vmem [shape: s32[128,1], index: 3, kind: output, shape index: {1}]
  %s4 = inlined_call_operand.hbm [shape: f32[2], index: 4, kind: output, shape index: {2}]
  %5 = xla_tuple %s2, %s3, %s4
  %s6 = sld [smem:[#allocation0]]
  $region50: #{tpu_custom_call.1} parent=0
    _
  %s8 = ssub.s32 1, %s6
  %s9 = scalar_select 0, %s8, %s6
  $region1: #{tpu_custom_call.1} parent=0
    #allocation2 [shape = 'u8[65536]{0}', space=vmem, size = 0x10000, scoped, tag = 'input window, operand 0, single buffered']
    #allocation3 [shape = 's32[1]{0}', space=sflag, size = 0x4, scoped, tag = 'scoped memory for tpu_custom_call.1']
    #allocation4 [shape = 's32[1]{0}', space=sflag, size = 0x4, scoped, tag = 'scoped memory for tpu_custom_call.1']
    #allocation5 [shape = 's32[1]{0}', space=sflag, size = 0x4, scoped, tag = 'scoped memory for tpu_custom_call.1']
    #allocation6 [shape = 'u8[65536]{0}', space=vmem, size = 0x10000, scoped, tag = 'input window, operand 1, single buffered']
    #allocation7 [shape = 's32[1]{0}', space=sflag, size = 0x4, scoped, tag = 'scoped memory for tpu_custom_call.1']
    #allocation8 [shape = 'u8[65536]{0}', space=vmem, size = 0x10000, scoped, tag = 'output window, operand 0, single buffered']
    #allocation9 [shape = 'u8[512]{0}', space=smem, size = 0x200, scoped, tag = 'output window, operand 2, single buffered']
    %10 = vsyncpa [#allocation3], 0
    %11 = vsyncpa [#allocation7], 0
    %12 = vsyncpa [#allocation4], 0
    %13 = vsyncpa [#allocation5], 0
    // Predicated region
    $region2: #{tpu_custom_call.1} parent=1 // pred_check
      _
    $region3: #{tpu_custom_call.1} parent=1 // pred_check_branch
      %15 = sbr.rel (0) target = $region5
    $region4: #{tpu_custom_call.1} parent=1 // pred_region
      %s17 = ssub.s32 2048, 2048
      %18 = vsyncadd [#allocation3], %s17
      %s19 = sshll.u32 [#allocation2], 4
      %s20 = int_to_ptr.vmem [resolvable:$true] %s19
      %25 = dma.hbm_to_vmem [thread:$0]  %s0, 2048, %s20, [#allocation3], 128, 128, 8
    $region5: #{tpu_custom_call.1} parent=1 // pred_fallthru
      _
    // Predicated region
    $region6: #{tpu_custom_call.1} parent=1 // pred_check
      _
    $region7: #{tpu_custom_call.1} parent=1 // pred_check_branch
      %27 = sbr.rel (0) target = $region9
    $region8: #{tpu_custom_call.1} parent=1 // pred_region
      %s29 = ssub.s32 2048, 2048
      %30 = vsyncadd [#allocation7], %s29
      %s31 = sshll.u32 [#allocation6], 4
      %s32 = int_to_ptr.vmem [resolvable:$true] %s31
      %37 = dma.hbm_to_vmem [thread:$0]  %s1, 2048, %s32, [#allocation7], 128, 128, 8
    $region9: #{tpu_custom_call.1} parent=1 // pred_fallthru
      _
    // Predicated region
    $region10: #{tpu_custom_call.1} parent=1 // pred_check
      _
    $region11: #{tpu_custom_call.1} parent=1 // pred_check_branch
      %39 = sbr.rel (0) target = $region13
    $region12: #{tpu_custom_call.1} parent=1 // pred_region
      %40 = dma.done [#allocation3], 2048
    $region13: #{tpu_custom_call.1} parent=1 // pred_fallthru
      _
    // Predicated region
    $region14: #{tpu_custom_call.1} parent=1 // pred_check
      _
    $region15: #{tpu_custom_call.1} parent=1 // pred_check_branch
      %42 = sbr.rel (0) target = $region17
    $region16: #{tpu_custom_call.1} parent=1 // pred_region
      %43 = dma.done [#allocation7], 2048
    $region17: #{tpu_custom_call.1} parent=1 // pred_fallthru
      _
    %p44 = scmp.eq.s32.totalorder 0, 0
    // Predicated region
    $region18: #{tpu_custom_call.1} parent=1 // pred_check
      %p45 = pneg %p44
    $region19: #{tpu_custom_call.1} parent=1 // pred_check_branch
      %47 = sbr.rel (%p45) target = $region21
    $region20: #{tpu_custom_call.1} parent=1 // pred_region
      %s48 = scalar_lea.smem [#allocation9], 0
      %49 = sst [smem:[%s48]] 0.0
      %s50 = scalar_lea.smem [#allocation9], 1
      %51 = sst [smem:[%s50]] 0.0
    $region21: #{tpu_custom_call.1} parent=1 // pred_fallthru
      _
    %v52 = vld [vmem:[#allocation2] sm:$0xff]
    %v53 = vld [vmem:[#allocation2 + $0x8] sm:$0xff]
    %v54 = vld [vmem:[#allocation2 + $0x10] sm:$0xff]
    %v55 = vld [vmem:[#allocation2 + $0x18] sm:$0xff]
    %v56 = vld [vmem:[#allocation2 + $0x20] sm:$0xff]
    %v57 = vld [vmem:[#allocation2 + $0x28] sm:$0xff]
    %v58 = vld [vmem:[#allocation2 + $0x30] sm:$0xff]
    %v59 = vld [vmem:[#allocation2 + $0x38] sm:$0xff]
    %v60 = vld [vmem:[#allocation2 + $0x40] sm:$0xff]
    %v61 = vld [vmem:[#allocation2 + $0x48] sm:$0xff]
    %v62 = vld [vmem:[#allocation2 + $0x50] sm:$0xff]
    %v63 = vld [vmem:[#allocation2 + $0x58] sm:$0xff]
    %v64 = vld [vmem:[#allocation2 + $0x60] sm:$0xff]
    %v65 = vld [vmem:[#allocation2 + $0x68] sm:$0xff]
    %v66 = vld [vmem:[#allocation2 + $0x70] sm:$0xff]
    %v67 = vld [vmem:[#allocation2 + $0x78] sm:$0xff]
    %v68 = vld [vmem:[#allocation6] sm:$0xff]
    %v69 = vld [vmem:[#allocation6 + $0x8] sm:$0xff]
    %v70 = vld [vmem:[#allocation6 + $0x10] sm:$0xff]
    %v71 = vld [vmem:[#allocation6 + $0x18] sm:$0xff]
    %v72 = vld [vmem:[#allocation6 + $0x20] sm:$0xff]
    %v73 = vld [vmem:[#allocation6 + $0x28] sm:$0xff]
    %v74 = vld [vmem:[#allocation6 + $0x30] sm:$0xff]
    %v75 = vld [vmem:[#allocation6 + $0x38] sm:$0xff]
    %v76 = vld [vmem:[#allocation6 + $0x40] sm:$0xff]
    %v77 = vld [vmem:[#allocation6 + $0x48] sm:$0xff]
    %v78 = vld [vmem:[#allocation6 + $0x50] sm:$0xff]
    %v79 = vld [vmem:[#allocation6 + $0x58] sm:$0xff]
    %v80 = vld [vmem:[#allocation6 + $0x60] sm:$0xff]
    %v81 = vld [vmem:[#allocation6 + $0x68] sm:$0xff]
    %v82 = vld [vmem:[#allocation6 + $0x70] sm:$0xff]
    %v83 = vld [vmem:[#allocation6 + $0x78] sm:$0xff]
    %v84 = vmul.f32 %v52, %v52
    %v85 = vmul.f32 %v53, %v53
    %v86 = vmul.f32 %v54, %v54
    %v87 = vmul.f32 %v55, %v55
    %v88 = vmul.f32 %v56, %v56
    %v89 = vmul.f32 %v57, %v57
    %v90 = vmul.f32 %v58, %v58
    %v91 = vmul.f32 %v59, %v59
    %v92 = vmul.f32 %v60, %v60
    %v93 = vmul.f32 %v61, %v61
    %v94 = vmul.f32 %v62, %v62
    %v95 = vmul.f32 %v63, %v63
    %v96 = vmul.f32 %v64, %v64
    %v97 = vmul.f32 %v65, %v65
    %v98 = vmul.f32 %v66, %v66
    %v99 = vmul.f32 %v67, %v67
    %100 = vadd.xlane.f32.xlu0 %v84
    %v101 = vpop.xlane.xlu0 %100
    %102 = vadd.xlane.f32.xlu0 %v85
    %v103 = vpop.xlane.xlu0 %102
    %104 = vadd.xlane.f32.xlu0 %v86
    %v105 = vpop.xlane.xlu0 %104
    %106 = vadd.xlane.f32.xlu0 %v87
    %v107 = vpop.xlane.xlu0 %106
    %108 = vadd.xlane.f32.xlu0 %v88
    %v109 = vpop.xlane.xlu0 %108
    %110 = vadd.xlane.f32.xlu0 %v89
    %v111 = vpop.xlane.xlu0 %110
    %112 = vadd.xlane.f32.xlu0 %v90
    %v113 = vpop.xlane.xlu0 %112
    %114 = vadd.xlane.f32.xlu0 %v91
    %v115 = vpop.xlane.xlu0 %114
    %116 = vadd.xlane.f32.xlu0 %v92
    %v117 = vpop.xlane.xlu0 %116
    %118 = vadd.xlane.f32.xlu0 %v93
    %v119 = vpop.xlane.xlu0 %118
    %120 = vadd.xlane.f32.xlu0 %v94
    %v121 = vpop.xlane.xlu0 %120
    %122 = vadd.xlane.f32.xlu0 %v95
    %v123 = vpop.xlane.xlu0 %122
    %124 = vadd.xlane.f32.xlu0 %v96
    %v125 = vpop.xlane.xlu0 %124
    %126 = vadd.xlane.f32.xlu0 %v97
    %v127 = vpop.xlane.xlu0 %126
    %128 = vadd.xlane.f32.xlu0 %v98
    %v129 = vpop.xlane.xlu0 %128
    %130 = vadd.xlane.f32.xlu0 %v99
    %v131 = vpop.xlane.xlu0 %130
    %v132 = vmul.f32 %v68, %v68
    %v133 = vmul.f32 %v69, %v69
    %v134 = vmul.f32 %v70, %v70
    %v135 = vmul.f32 %v71, %v71
    %v136 = vmul.f32 %v72, %v72
    %v137 = vmul.f32 %v73, %v73
    %v138 = vmul.f32 %v74, %v74
    %v139 = vmul.f32 %v75, %v75
    %v140 = vmul.f32 %v76, %v76
    %v141 = vmul.f32 %v77, %v77
    %v142 = vmul.f32 %v78, %v78
    %v143 = vmul.f32 %v79, %v79
    %v144 = vmul.f32 %v80, %v80
    %v145 = vmul.f32 %v81, %v81
    %v146 = vmul.f32 %v82, %v82
    %v147 = vmul.f32 %v83, %v83
    %v148 = vadd.f32 %v132, %v133
    %v149 = vadd.f32 %v148, %v134
    %v150 = vadd.f32 %v149, %v135
    %v151 = vadd.f32 %v150, %v136
    %v152 = vadd.f32 %v151, %v137
    %v153 = vadd.f32 %v152, %v138
    %v154 = vadd.f32 %v153, %v139
    %v155 = vadd.f32 %v154, %v140
    %v156 = vadd.f32 %v155, %v141
    %v157 = vadd.f32 %v156, %v142
    %v158 = vadd.f32 %v157, %v143
    %v159 = vadd.f32 %v158, %v144
    %v160 = vadd.f32 %v159, %v145
    %v161 = vadd.f32 %v160, %v146
    %v162 = vadd.f32 %v161, %v147
    %v163 = vrot.slane %v162, 4
    %v164 = vadd.f32 %v162, %v163
    %v165 = vrot.slane %v164, 2
    %v166 = vadd.f32 %v164, %v165
    %v167 = vrot.slane %v166, 1
    %v168 = vadd.f32 %v166, %v167
    %169 = vmatprep.subr.mxu0 0.0
    %170 = vmatpush1.msra.mxu0 %v83
    %171 = vmatprep.subr.mxu0 0.0
    %172 = vmatpush1.msra.mxu0 %v82
    %173 = vmatprep.subr.mxu0 0.0
    %174 = vmatpush1.msra.mxu0 %v81
    %175 = vmatprep.subr.mxu0 0.0
    %176 = vmatpush1.msra.mxu0 %v80
    %177 = vmatprep.subr.mxu0 0.0
    %178 = vmatpush1.msra.mxu0 %v79
    %179 = vmatprep.subr.mxu0 0.0
    %180 = vmatpush1.msra.mxu0 %v78
    %181 = vmatprep.subr.mxu0 0.0
    %182 = vmatpush1.msra.mxu0 %v77
    %183 = vmatprep.subr.mxu0 0.0
    %184 = vmatpush1.msra.mxu0 %v76
    %185 = vmatprep.subr.mxu0 0.0
    %186 = vmatpush1.msra.mxu0 %v75
    %187 = vmatprep.subr.mxu0 0.0
    %188 = vmatpush1.msra.mxu0 %v74
    %189 = vmatprep.subr.mxu0 0.0
    %190 = vmatpush1.msra.mxu0 %v73
    %191 = vmatprep.subr.mxu0 0.0
    %192 = vmatpush1.msra.mxu0 %v72
    %193 = vmatprep.subr.mxu0 0.0
    %194 = vmatpush1.msra.mxu0 %v71
    %195 = vmatprep.subr.mxu0 0.0
    %196 = vmatpush1.msra.mxu0 %v70
    %197 = vmatprep.subr.mxu0 0.0
    %198 = vmatpush1.msra.mxu0 %v69
    %199 = vmatprep.subr.mxu0 0.0
    %200 = vmatpush1.msra.mxu0 %v68
    %201 = vmatprep.subr.mxu0 0.0
    %202 = vmatpush2.msra.mxu0 0.0
    %203 = vmatprep.subr.mxu0 0.0
    %204 = vmatpush2.msra.mxu0 0.0
    %205 = vmatprep.subr.mxu0 0.0
    %206 = vmatpush2.msra.mxu0 0.0
    %207 = vmatprep.subr.mxu0 0.0
    %208 = vmatpush2.msra.mxu0 0.0
    %209 = vmatprep.subr.mxu0 0.0
    %210 = vmatpush2.msra.mxu0 0.0
    %211 = vmatprep.subr.mxu0 0.0
    %212 = vmatpush2.msra.mxu0 0.0
    %213 = vmatprep.subr.mxu0 0.0
    %214 = vmatpush2.msra.mxu0 0.0
    %215 = vmatprep.subr.mxu0 0.0
    %216 = vmatpush2.msra.mxu0 0.0
    %217 = vmatprep.subr.mxu0 0.0
    %218 = vmatpush2.msra.mxu0 0.0
    %219 = vmatprep.subr.mxu0 0.0
    %220 = vmatpush2.msra.mxu0 0.0
    %221 = vmatprep.subr.mxu0 0.0
    %222 = vmatpush2.msra.mxu0 0.0
    %223 = vmatprep.subr.mxu0 0.0
    %224 = vmatpush2.msra.mxu0 0.0
    %225 = vmatprep.subr.mxu0 0.0
    %226 = vmatpush2.msra.mxu0 0.0
    %227 = vmatprep.subr.mxu0 0.0
    %228 = vmatpush2.msra.mxu0 0.0
    %229 = vmatprep.subr.mxu0 0.0
    %230 = vmatpush2.msra.mxu0 0.0
    %231 = vmatprep.subr.mxu0 0.0
    %232 = vmatpush2.msra.mxu0 0.0
    %233 = vmatprep.mubr.f32.mxu0 0.0
    %234 = vmatmul.mubr.f32.gmra.mxu0 %v52
    %v235 = vpop.f32.mrf.mxu0
    %v236 = vadd.f32 0.0, %v235
    %v237 = vpop.f32.mrf.mxu0
    %238 = vmatprep.mubr.f32.mxu0 0.0
    %239 = vmatmul.mubr.f32.gmra.mxu0 %v53
    %v240 = vpop.f32.mrf.mxu0
    %v241 = vadd.f32 0.0, %v240
    %v242 = vpop.f32.mrf.mxu0
    %243 = vmatprep.mubr.f32.mxu0 0.0
    %244 = vmatmul.mubr.f32.gmra.mxu0 %v54
    %v245 = vpop.f32.mrf.mxu0
    %v246 = vadd.f32 0.0, %v245
    %v247 = vpop.f32.mrf.mxu0
    %248 = vmatprep.mubr.f32.mxu0 0.0
    %249 = vmatmul.mubr.f32.gmra.mxu0 %v55
    %v250 = vpop.f32.mrf.mxu0
    %v251 = vadd.f32 0.0, %v250
    %v252 = vpop.f32.mrf.mxu0
    %253 = vmatprep.mubr.f32.mxu0 0.0
    %254 = vmatmul.mubr.f32.gmra.mxu0 %v56
    %v255 = vpop.f32.mrf.mxu0
    %v256 = vadd.f32 0.0, %v255
    %v257 = vpop.f32.mrf.mxu0
    %258 = vmatprep.mubr.f32.mxu0 0.0
    %259 = vmatmul.mubr.f32.gmra.mxu0 %v57
    %v260 = vpop.f32.mrf.mxu0
    %v261 = vadd.f32 0.0, %v260
    %v262 = vpop.f32.mrf.mxu0
    %263 = vmatprep.mubr.f32.mxu0 0.0
    %264 = vmatmul.mubr.f32.gmra.mxu0 %v58
    %v265 = vpop.f32.mrf.mxu0
    %v266 = vadd.f32 0.0, %v265
    %v267 = vpop.f32.mrf.mxu0
    %268 = vmatprep.mubr.f32.mxu0 0.0
    %269 = vmatmul.mubr.f32.gmra.mxu0 %v59
    %v270 = vpop.f32.mrf.mxu0
    %v271 = vadd.f32 0.0, %v270
    %v272 = vpop.f32.mrf.mxu0
    %273 = vmatprep.mubr.f32.mxu0 0.0
    %274 = vmatmul.mubr.f32.gmra.mxu0 %v60
    %v275 = vpop.f32.mrf.mxu0
    %v276 = vadd.f32 0.0, %v275
    %v277 = vpop.f32.mrf.mxu0
    %278 = vmatprep.mubr.f32.mxu0 0.0
    %279 = vmatmul.mubr.f32.gmra.mxu0 %v61
    %v280 = vpop.f32.mrf.mxu0
    %v281 = vadd.f32 0.0, %v280
    %v282 = vpop.f32.mrf.mxu0
    %283 = vmatprep.mubr.f32.mxu0 0.0
    %284 = vmatmul.mubr.f32.gmra.mxu0 %v62
    %v285 = vpop.f32.mrf.mxu0
    %v286 = vadd.f32 0.0, %v285
    %v287 = vpop.f32.mrf.mxu0
    %288 = vmatprep.mubr.f32.mxu0 0.0
    %289 = vmatmul.mubr.f32.gmra.mxu0 %v63
    %v290 = vpop.f32.mrf.mxu0
    %v291 = vadd.f32 0.0, %v290
    %v292 = vpop.f32.mrf.mxu0
    %293 = vmatprep.mubr.f32.mxu0 0.0
    %294 = vmatmul.mubr.f32.gmra.mxu0 %v64
    %v295 = vpop.f32.mrf.mxu0
    %v296 = vadd.f32 0.0, %v295
    %v297 = vpop.f32.mrf.mxu0
    %298 = vmatprep.mubr.f32.mxu0 0.0
    %299 = vmatmul.mubr.f32.gmra.mxu0 %v65
    %v300 = vpop.f32.mrf.mxu0
    %v301 = vadd.f32 0.0, %v300
    %v302 = vpop.f32.mrf.mxu0
    %303 = vmatprep.mubr.f32.mxu0 0.0
    %304 = vmatmul.mubr.f32.gmra.mxu0 %v66
    %v305 = vpop.f32.mrf.mxu0
    %v306 = vadd.f32 0.0, %v305
    %v307 = vpop.f32.mrf.mxu0
    %308 = vmatprep.mubr.f32.mxu0 0.0
    %309 = vmatmul.mubr.f32.gmra.mxu0 %v67
    %v310 = vpop.f32.mrf.mxu0
    %v311 = vadd.f32 0.0, %v310
    %v312 = vpop.f32.mrf.mxu0
    %313 = vdwg.mxu0
    %v314 = vmul.f32 %v236, 2.0
    %v315 = vmul.f32 %v241, 2.0
    %v316 = vmul.f32 %v246, 2.0
    %v317 = vmul.f32 %v251, 2.0
    %v318 = vmul.f32 %v256, 2.0
    %v319 = vmul.f32 %v261, 2.0
    %v320 = vmul.f32 %v266, 2.0
    %v321 = vmul.f32 %v271, 2.0
    %v322 = vmul.f32 %v276, 2.0
    %v323 = vmul.f32 %v281, 2.0
    %v324 = vmul.f32 %v286, 2.0
    %v325 = vmul.f32 %v291, 2.0
    %v326 = vmul.f32 %v296, 2.0
    %v327 = vmul.f32 %v301, 2.0
    %v328 = vmul.f32 %v306, 2.0
    %v329 = vmul.f32 %v311, 2.0
    %v330 = vsub.f32 %v101, %v314
    %v331 = vsub.f32 %v103, %v315
    %v332 = vsub.f32 %v105, %v316
    %v333 = vsub.f32 %v107, %v317
    %v334 = vsub.f32 %v109, %v318
    %v335 = vsub.f32 %v111, %v319
    %v336 = vsub.f32 %v113, %v320
    %v337 = vsub.f32 %v115, %v321
    %v338 = vsub.f32 %v117, %v322
    %v339 = vsub.f32 %v119, %v323
    %v340 = vsub.f32 %v121, %v324
    %v341 = vsub.f32 %v123, %v325
    %v342 = vsub.f32 %v125, %v326
    %v343 = vsub.f32 %v127, %v327
    %v344 = vsub.f32 %v129, %v328
    %v345 = vsub.f32 %v131, %v329
    %v346 = vadd.f32 %v330, %v168
    %v347 = vadd.f32 %v331, %v168
    %v348 = vadd.f32 %v332, %v168
    %v349 = vadd.f32 %v333, %v168
    %v350 = vadd.f32 %v334, %v168
    %v351 = vadd.f32 %v335, %v168
    %v352 = vadd.f32 %v336, %v168
    %v353 = vadd.f32 %v337, %v168
    %v354 = vadd.f32 %v338, %v168
    %v355 = vadd.f32 %v339, %v168
    %v356 = vadd.f32 %v340, %v168
    %v357 = vadd.f32 %v341, %v168
    %v358 = vadd.f32 %v342, %v168
    %v359 = vadd.f32 %v343, %v168
    %v360 = vadd.f32 %v344, %v168
    %v361 = vadd.f32 %v345, %v168
    %v362 = vlaneseq
    %v363 = vand.u32 %v362, 127
    %364 = vmin.xlane.f32.xlu0 %v346
    %v365 = vpop.xlane.xlu0 %364
    %366 = vmin.xlane.f32.xlu0 %v347
    %v367 = vpop.xlane.xlu0 %366
    %368 = vmin.xlane.f32.xlu0 %v348
    %v369 = vpop.xlane.xlu0 %368
    %370 = vmin.xlane.f32.xlu0 %v349
    %v371 = vpop.xlane.xlu0 %370
    %372 = vmin.xlane.f32.xlu0 %v350
    %v373 = vpop.xlane.xlu0 %372
    %374 = vmin.xlane.f32.xlu0 %v351
    %v375 = vpop.xlane.xlu0 %374
    %376 = vmin.xlane.f32.xlu0 %v352
    %v377 = vpop.xlane.xlu0 %376
    %378 = vmin.xlane.f32.xlu0 %v353
    %v379 = vpop.xlane.xlu0 %378
    %380 = vmin.xlane.f32.xlu0 %v354
    %v381 = vpop.xlane.xlu0 %380
    %382 = vmin.xlane.f32.xlu0 %v355
    %v383 = vpop.xlane.xlu0 %382
    %384 = vmin.xlane.f32.xlu0 %v356
    %v385 = vpop.xlane.xlu0 %384
    %386 = vmin.xlane.f32.xlu0 %v357
    %v387 = vpop.xlane.xlu0 %386
    %388 = vmin.xlane.f32.xlu0 %v358
    %v389 = vpop.xlane.xlu0 %388
    %390 = vmin.xlane.f32.xlu0 %v359
    %v391 = vpop.xlane.xlu0 %390
    %392 = vmin.xlane.f32.xlu0 %v360
    %v393 = vpop.xlane.xlu0 %392
    %394 = vmin.xlane.f32.xlu0 %v361
    %v395 = vpop.xlane.xlu0 %394
    %vm396 = vcmp.eq.f32.partialorder %v346, %v365
    %vm397 = vcmp.eq.f32.partialorder %v347, %v367
    %vm398 = vcmp.eq.f32.partialorder %v348, %v369
    %vm399 = vcmp.eq.f32.partialorder %v349, %v371
    %vm400 = vcmp.eq.f32.partialorder %v350, %v373
    %vm401 = vcmp.eq.f32.partialorder %v351, %v375
    %vm402 = vcmp.eq.f32.partialorder %v352, %v377
    %vm403 = vcmp.eq.f32.partialorder %v353, %v379
    %vm404 = vcmp.eq.f32.partialorder %v354, %v381
    %vm405 = vcmp.eq.f32.partialorder %v355, %v383
    %vm406 = vcmp.eq.f32.partialorder %v356, %v385
    %vm407 = vcmp.eq.f32.partialorder %v357, %v387
    %vm408 = vcmp.eq.f32.partialorder %v358, %v389
    %vm409 = vcmp.eq.f32.partialorder %v359, %v391
    %vm410 = vcmp.eq.f32.partialorder %v360, %v393
    %vm411 = vcmp.eq.f32.partialorder %v361, %v395
    %v412 = vsel %vm396, %v363, 128
    %v413 = vsel %vm397, %v363, 128
    %v414 = vsel %vm398, %v363, 128
    %v415 = vsel %vm399, %v363, 128
    %v416 = vsel %vm400, %v363, 128
    %v417 = vsel %vm401, %v363, 128
    %v418 = vsel %vm402, %v363, 128
    %v419 = vsel %vm403, %v363, 128
    %v420 = vsel %vm404, %v363, 128
    %v421 = vsel %vm405, %v363, 128
    %v422 = vsel %vm406, %v363, 128
    %v423 = vsel %vm407, %v363, 128
    %v424 = vsel %vm408, %v363, 128
    %v425 = vsel %vm409, %v363, 128
    %v426 = vsel %vm410, %v363, 128
    %v427 = vsel %vm411, %v363, 128
    %v428 = vand.u32 %v412, 65535
    %v429 = vshra.s32 %v412, 16
    %v430 = vcvt.s32.f32 %v428
    %v431 = vcvt.s32.f32 %v429
    %432 = vmin.xlane.f32.xlu0 %v431
    %v433 = vpop.xlane.xlu0 %432
    %vm434 = vcmp.eq.f32.partialorder %v431, %v433
    %v435 = vsel %vm434, %v430, inf
    %436 = vmin.xlane.f32.xlu0 %v435
    %v437 = vpop.xlane.xlu0 %436
    %v438 = vcvt.f32.s32 %v437
    %v439 = vcvt.f32.s32 %v433
    %v440 = vshll.u32 %v439, 16
    %v441 = vadd.s32 %v440, %v438
    %v442 = vand.u32 %v413, 65535
    %v443 = vshra.s32 %v413, 16
    %v444 = vcvt.s32.f32 %v442
    %v445 = vcvt.s32.f32 %v443
    %446 = vmin.xlane.f32.xlu0 %v445
    %v447 = vpop.xlane.xlu0 %446
    %vm448 = vcmp.eq.f32.partialorder %v445, %v447
    %v449 = vsel %vm448, %v444, inf
    %450 = vmin.xlane.f32.xlu0 %v449
    %v451 = vpop.xlane.xlu0 %450
    %v452 = vcvt.f32.s32 %v451
    %v453 = vcvt.f32.s32 %v447
    %v454 = vshll.u32 %v453, 16
    %v455 = vadd.s32 %v454, %v452
    %v456 = vand.u32 %v414, 65535
    %v457 = vshra.s32 %v414, 16
    %v458 = vcvt.s32.f32 %v456
    %v459 = vcvt.s32.f32 %v457
    %460 = vmin.xlane.f32.xlu0 %v459
    %v461 = vpop.xlane.xlu0 %460
    %vm462 = vcmp.eq.f32.partialorder %v459, %v461
    %v463 = vsel %vm462, %v458, inf
    %464 = vmin.xlane.f32.xlu0 %v463
    %v465 = vpop.xlane.xlu0 %464
    %v466 = vcvt.f32.s32 %v465
    %v467 = vcvt.f32.s32 %v461
    %v468 = vshll.u32 %v467, 16
    %v469 = vadd.s32 %v468, %v466
    %v470 = vand.u32 %v415, 65535
    %v471 = vshra.s32 %v415, 16
    %v472 = vcvt.s32.f32 %v470
    %v473 = vcvt.s32.f32 %v471
    %474 = vmin.xlane.f32.xlu0 %v473
    %v475 = vpop.xlane.xlu0 %474
    %vm476 = vcmp.eq.f32.partialorder %v473, %v475
    %v477 = vsel %vm476, %v472, inf
    %478 = vmin.xlane.f32.xlu0 %v477
    %v479 = vpop.xlane.xlu0 %478
    %v480 = vcvt.f32.s32 %v479
    %v481 = vcvt.f32.s32 %v475
    %v482 = vshll.u32 %v481, 16
    %v483 = vadd.s32 %v482, %v480
    %v484 = vand.u32 %v416, 65535
    %v485 = vshra.s32 %v416, 16
    %v486 = vcvt.s32.f32 %v484
    %v487 = vcvt.s32.f32 %v485
    %488 = vmin.xlane.f32.xlu0 %v487
    %v489 = vpop.xlane.xlu0 %488
    %vm490 = vcmp.eq.f32.partialorder %v487, %v489
    %v491 = vsel %vm490, %v486, inf
    %492 = vmin.xlane.f32.xlu0 %v491
    %v493 = vpop.xlane.xlu0 %492
    %v494 = vcvt.f32.s32 %v493
    %v495 = vcvt.f32.s32 %v489
    %v496 = vshll.u32 %v495, 16
    %v497 = vadd.s32 %v496, %v494
    %v498 = vand.u32 %v417, 65535
    %v499 = vshra.s32 %v417, 16
    %v500 = vcvt.s32.f32 %v498
    %v501 = vcvt.s32.f32 %v499
    %502 = vmin.xlane.f32.xlu0 %v501
    %v503 = vpop.xlane.xlu0 %502
    %vm504 = vcmp.eq.f32.partialorder %v501, %v503
    %v505 = vsel %vm504, %v500, inf
    %506 = vmin.xlane.f32.xlu0 %v505
    %v507 = vpop.xlane.xlu0 %506
    %v508 = vcvt.f32.s32 %v507
    %v509 = vcvt.f32.s32 %v503
    %v510 = vshll.u32 %v509, 16
    %v511 = vadd.s32 %v510, %v508
    %v512 = vand.u32 %v418, 65535
    %v513 = vshra.s32 %v418, 16
    %v514 = vcvt.s32.f32 %v512
    %v515 = vcvt.s32.f32 %v513
    %516 = vmin.xlane.f32.xlu0 %v515
    %v517 = vpop.xlane.xlu0 %516
    %vm518 = vcmp.eq.f32.partialorder %v515, %v517
    %v519 = vsel %vm518, %v514, inf
    %520 = vmin.xlane.f32.xlu0 %v519
    %v521 = vpop.xlane.xlu0 %520
    %v522 = vcvt.f32.s32 %v521
    %v523 = vcvt.f32.s32 %v517
    %v524 = vshll.u32 %v523, 16
    %v525 = vadd.s32 %v524, %v522
    %v526 = vand.u32 %v419, 65535
    %v527 = vshra.s32 %v419, 16
    %v528 = vcvt.s32.f32 %v526
    %v529 = vcvt.s32.f32 %v527
    %530 = vmin.xlane.f32.xlu0 %v529
    %v531 = vpop.xlane.xlu0 %530
    %vm532 = vcmp.eq.f32.partialorder %v529, %v531
    %v533 = vsel %vm532, %v528, inf
    %534 = vmin.xlane.f32.xlu0 %v533
    %v535 = vpop.xlane.xlu0 %534
    %v536 = vcvt.f32.s32 %v535
    %v537 = vcvt.f32.s32 %v531
    %v538 = vshll.u32 %v537, 16
    %v539 = vadd.s32 %v538, %v536
    %v540 = vand.u32 %v420, 65535
    %v541 = vshra.s32 %v420, 16
    %v542 = vcvt.s32.f32 %v540
    %v543 = vcvt.s32.f32 %v541
    %544 = vmin.xlane.f32.xlu0 %v543
    %v545 = vpop.xlane.xlu0 %544
    %vm546 = vcmp.eq.f32.partialorder %v543, %v545
    %v547 = vsel %vm546, %v542, inf
    %548 = vmin.xlane.f32.xlu0 %v547
    %v549 = vpop.xlane.xlu0 %548
    %v550 = vcvt.f32.s32 %v549
    %v551 = vcvt.f32.s32 %v545
    %v552 = vshll.u32 %v551, 16
    %v553 = vadd.s32 %v552, %v550
    %v554 = vand.u32 %v421, 65535
    %v555 = vshra.s32 %v421, 16
    %v556 = vcvt.s32.f32 %v554
    %v557 = vcvt.s32.f32 %v555
    %558 = vmin.xlane.f32.xlu0 %v557
    %v559 = vpop.xlane.xlu0 %558
    %vm560 = vcmp.eq.f32.partialorder %v557, %v559
    %v561 = vsel %vm560, %v556, inf
    %562 = vmin.xlane.f32.xlu0 %v561
    %v563 = vpop.xlane.xlu0 %562
    %v564 = vcvt.f32.s32 %v563
    %v565 = vcvt.f32.s32 %v559
    %v566 = vshll.u32 %v565, 16
    %v567 = vadd.s32 %v566, %v564
    %v568 = vand.u32 %v422, 65535
    %v569 = vshra.s32 %v422, 16
    %v570 = vcvt.s32.f32 %v568
    %v571 = vcvt.s32.f32 %v569
    %572 = vmin.xlane.f32.xlu0 %v571
    %v573 = vpop.xlane.xlu0 %572
    %vm574 = vcmp.eq.f32.partialorder %v571, %v573
    %v575 = vsel %vm574, %v570, inf
    %576 = vmin.xlane.f32.xlu0 %v575
    %v577 = vpop.xlane.xlu0 %576
    %v578 = vcvt.f32.s32 %v577
    %v579 = vcvt.f32.s32 %v573
    %v580 = vshll.u32 %v579, 16
    %v581 = vadd.s32 %v580, %v578
    %v582 = vand.u32 %v423, 65535
    %v583 = vshra.s32 %v423, 16
    %v584 = vcvt.s32.f32 %v582
    %v585 = vcvt.s32.f32 %v583
    %586 = vmin.xlane.f32.xlu0 %v585
    %v587 = vpop.xlane.xlu0 %586
    %vm588 = vcmp.eq.f32.partialorder %v585, %v587
    %v589 = vsel %vm588, %v584, inf
    %590 = vmin.xlane.f32.xlu0 %v589
    %v591 = vpop.xlane.xlu0 %590
    %v592 = vcvt.f32.s32 %v591
    %v593 = vcvt.f32.s32 %v587
    %v594 = vshll.u32 %v593, 16
    %v595 = vadd.s32 %v594, %v592
    %v596 = vand.u32 %v424, 65535
    %v597 = vshra.s32 %v424, 16
    %v598 = vcvt.s32.f32 %v596
    %v599 = vcvt.s32.f32 %v597
    %600 = vmin.xlane.f32.xlu0 %v599
    %v601 = vpop.xlane.xlu0 %600
    %vm602 = vcmp.eq.f32.partialorder %v599, %v601
    %v603 = vsel %vm602, %v598, inf
    %604 = vmin.xlane.f32.xlu0 %v603
    %v605 = vpop.xlane.xlu0 %604
    %v606 = vcvt.f32.s32 %v605
    %v607 = vcvt.f32.s32 %v601
    %v608 = vshll.u32 %v607, 16
    %v609 = vadd.s32 %v608, %v606
    %v610 = vand.u32 %v425, 65535
    %v611 = vshra.s32 %v425, 16
    %v612 = vcvt.s32.f32 %v610
    %v613 = vcvt.s32.f32 %v611
    %614 = vmin.xlane.f32.xlu0 %v613
    %v615 = vpop.xlane.xlu0 %614
    %vm616 = vcmp.eq.f32.partialorder %v613, %v615
    %v617 = vsel %vm616, %v612, inf
    %618 = vmin.xlane.f32.xlu0 %v617
    %v619 = vpop.xlane.xlu0 %618
    %v620 = vcvt.f32.s32 %v619
    %v621 = vcvt.f32.s32 %v615
    %v622 = vshll.u32 %v621, 16
    %v623 = vadd.s32 %v622, %v620
    %v624 = vand.u32 %v426, 65535
    %v625 = vshra.s32 %v426, 16
    %v626 = vcvt.s32.f32 %v624
    %v627 = vcvt.s32.f32 %v625
    %628 = vmin.xlane.f32.xlu0 %v627
    %v629 = vpop.xlane.xlu0 %628
    %vm630 = vcmp.eq.f32.partialorder %v627, %v629
    %v631 = vsel %vm630, %v626, inf
    %632 = vmin.xlane.f32.xlu0 %v631
    %v633 = vpop.xlane.xlu0 %632
    %v634 = vcvt.f32.s32 %v633
    %v635 = vcvt.f32.s32 %v629
    %v636 = vshll.u32 %v635, 16
    %v637 = vadd.s32 %v636, %v634
    %v638 = vand.u32 %v427, 65535
    %v639 = vshra.s32 %v427, 16
    %v640 = vcvt.s32.f32 %v638
    %v641 = vcvt.s32.f32 %v639
    %642 = vmin.xlane.f32.xlu0 %v641
    %v643 = vpop.xlane.xlu0 %642
    %vm644 = vcmp.eq.f32.partialorder %v641, %v643
    %v645 = vsel %vm644, %v640, inf
    %646 = vmin.xlane.f32.xlu0 %v645
    %v647 = vpop.xlane.xlu0 %646
    %v648 = vcvt.f32.s32 %v647
    %v649 = vcvt.f32.s32 %v643
    %v650 = vshll.u32 %v649, 16
    %v651 = vadd.s32 %v650, %v648
    %vm652 = vcmask 7168
    %653 = vst.msk [vmem:[%s3] sm:$0xff] %vm652, %v441
    %654 = vst.msk [vmem:[%s3 + $0x8] sm:$0xff] %vm652, %v455
    %655 = vst.msk [vmem:[%s3 + $0x10] sm:$0xff] %vm652, %v469
    %656 = vst.msk [vmem:[%s3 + $0x18] sm:$0xff] %vm652, %v483
    %657 = vst.msk [vmem:[%s3 + $0x20] sm:$0xff] %vm652, %v497
    %658 = vst.msk [vmem:[%s3 + $0x28] sm:$0xff] %vm652, %v511
    %659 = vst.msk [vmem:[%s3 + $0x30] sm:$0xff] %vm652, %v525
    %660 = vst.msk [vmem:[%s3 + $0x38] sm:$0xff] %vm652, %v539
    %661 = vst.msk [vmem:[%s3 + $0x40] sm:$0xff] %vm652, %v553
    %662 = vst.msk [vmem:[%s3 + $0x48] sm:$0xff] %vm652, %v567
    %663 = vst.msk [vmem:[%s3 + $0x50] sm:$0xff] %vm652, %v581
    %664 = vst.msk [vmem:[%s3 + $0x58] sm:$0xff] %vm652, %v595
    %665 = vst.msk [vmem:[%s3 + $0x60] sm:$0xff] %vm652, %v609
    %666 = vst.msk [vmem:[%s3 + $0x68] sm:$0xff] %vm652, %v623
    %667 = vst.msk [vmem:[%s3 + $0x70] sm:$0xff] %vm652, %v637
    %668 = vst.msk [vmem:[%s3 + $0x78] sm:$0xff] %vm652, %v651
    %vm669 = vcmp.eq.s32.totalorder %v363, %v441
    %vm670 = vcmp.eq.s32.totalorder %v363, %v455
    %vm671 = vcmp.eq.s32.totalorder %v363, %v469
    %vm672 = vcmp.eq.s32.totalorder %v363, %v483
    %vm673 = vcmp.eq.s32.totalorder %v363, %v497
    %vm674 = vcmp.eq.s32.totalorder %v363, %v511
    %vm675 = vcmp.eq.s32.totalorder %v363, %v525
    %vm676 = vcmp.eq.s32.totalorder %v363, %v539
    %vm677 = vcmp.eq.s32.totalorder %v363, %v553
    %vm678 = vcmp.eq.s32.totalorder %v363, %v567
    %vm679 = vcmp.eq.s32.totalorder %v363, %v581
    %vm680 = vcmp.eq.s32.totalorder %v363, %v595
    %vm681 = vcmp.eq.s32.totalorder %v363, %v609
    %vm682 = vcmp.eq.s32.totalorder %v363, %v623
    %vm683 = vcmp.eq.s32.totalorder %v363, %v637
    %vm684 = vcmp.eq.s32.totalorder %v363, %v651
    %v685 = vsel %vm669, 1, 0
    %v686 = vsel %vm670, 1, 0
    %v687 = vsel %vm671, 1, 0
    %v688 = vsel %vm672, 1, 0
    %v689 = vsel %vm673, 1, 0
    %v690 = vsel %vm674, 1, 0
    %v691 = vsel %vm675, 1, 0
    %v692 = vsel %vm676, 1, 0
    %v693 = vsel %vm677, 1, 0
    %v694 = vsel %vm678, 1, 0
    %v695 = vsel %vm679, 1, 0
    %v696 = vsel %vm680, 1, 0
    %v697 = vsel %vm681, 1, 0
    %v698 = vsel %vm682, 1, 0
    %v699 = vsel %vm683, 1, 0
    %v700 = vsel %vm684, 1, 0
    %v701 = vcvt.s32.f32 %v685
    %v702 = vcvt.s32.f32 %v686
    %v703 = vcvt.s32.f32 %v687
    %v704 = vcvt.s32.f32 %v688
    %v705 = vcvt.s32.f32 %v689
    %v706 = vcvt.s32.f32 %v690
    %v707 = vcvt.s32.f32 %v691
    %v708 = vcvt.s32.f32 %v692
    %v709 = vcvt.s32.f32 %v693
    %v710 = vcvt.s32.f32 %v694
    %v711 = vcvt.s32.f32 %v695
    %v712 = vcvt.s32.f32 %v696
    %v713 = vcvt.s32.f32 %v697
    %v714 = vcvt.s32.f32 %v698
    %v715 = vcvt.s32.f32 %v699
    %v716 = vcvt.s32.f32 %v700
    %717 = vmatprep.subr.mxu0 0.0
    %718 = vmatpush1.xpose.msra.mxu0 %v83
    %719 = vmatprep.subr.mxu0 0.0
    %720 = vmatpush1.xpose.msra.mxu0 %v82
    %721 = vmatprep.subr.mxu0 0.0
    %722 = vmatpush1.xpose.msra.mxu0 %v81
    %723 = vmatprep.subr.mxu0 0.0
    %724 = vmatpush1.xpose.msra.mxu0 %v80
    %725 = vmatprep.subr.mxu0 0.0
    %726 = vmatpush1.xpose.msra.mxu0 %v79
    %727 = vmatprep.subr.mxu0 0.0
    %728 = vmatpush1.xpose.msra.mxu0 %v78
    %729 = vmatprep.subr.mxu0 0.0
    %730 = vmatpush1.xpose.msra.mxu0 %v77
    %731 = vmatprep.subr.mxu0 0.0
    %732 = vmatpush1.xpose.msra.mxu0 %v76
    %733 = vmatprep.subr.mxu0 0.0
    %734 = vmatpush1.xpose.msra.mxu0 %v75
    %735 = vmatprep.subr.mxu0 0.0
    %736 = vmatpush1.xpose.msra.mxu0 %v74
    %737 = vmatprep.subr.mxu0 0.0
    %738 = vmatpush1.xpose.msra.mxu0 %v73
    %739 = vmatprep.subr.mxu0 0.0
    %740 = vmatpush1.xpose.msra.mxu0 %v72
    %741 = vmatprep.subr.mxu0 0.0
    %742 = vmatpush1.xpose.msra.mxu0 %v71
    %743 = vmatprep.subr.mxu0 0.0
    %744 = vmatpush1.xpose.msra.mxu0 %v70
    %745 = vmatprep.subr.mxu0 0.0
    %746 = vmatpush1.xpose.msra.mxu0 %v69
    %747 = vmatprep.subr.mxu0 0.0
    %748 = vmatpush1.xpose.msra.mxu0 %v68
    %749 = vmatprep.subr.mxu0 0.0
    %750 = vmatpush2.xpose.msra.mxu0 0.0
    %751 = vmatprep.subr.mxu0 0.0
    %752 = vmatpush2.xpose.msra.mxu0 0.0
    %753 = vmatprep.subr.mxu0 0.0
    %754 = vmatpush2.xpose.msra.mxu0 0.0
    %755 = vmatprep.subr.mxu0 0.0
    %756 = vmatpush2.xpose.msra.mxu0 0.0
    %757 = vmatprep.subr.mxu0 0.0
    %758 = vmatpush2.xpose.msra.mxu0 0.0
    %759 = vmatprep.subr.mxu0 0.0
    %760 = vmatpush2.xpose.msra.mxu0 0.0
    %761 = vmatprep.subr.mxu0 0.0
    %762 = vmatpush2.xpose.msra.mxu0 0.0
    %763 = vmatprep.subr.mxu0 0.0
    %764 = vmatpush2.xpose.msra.mxu0 0.0
    %765 = vmatprep.subr.mxu0 0.0
    %766 = vmatpush2.xpose.msra.mxu0 0.0
    %767 = vmatprep.subr.mxu0 0.0
    %768 = vmatpush2.xpose.msra.mxu0 0.0
    %769 = vmatprep.subr.mxu0 0.0
    %770 = vmatpush2.xpose.msra.mxu0 0.0
    %771 = vmatprep.subr.mxu0 0.0
    %772 = vmatpush2.xpose.msra.mxu0 0.0
    %773 = vmatprep.subr.mxu0 0.0
    %774 = vmatpush2.xpose.msra.mxu0 0.0
    %775 = vmatprep.subr.mxu0 0.0
    %776 = vmatpush2.xpose.msra.mxu0 0.0
    %777 = vmatprep.subr.mxu0 0.0
    %778 = vmatpush2.xpose.msra.mxu0 0.0
    %779 = vmatprep.subr.mxu0 0.0
    %780 = vmatpush2.xpose.msra.mxu0 0.0
    %781 = vmatprep.mubr.f32.mxu0 0.0
    %782 = vmatmul.mubr.f32.gmra.mxu0 %v701
    %v783 = vpop.f32.mrf.mxu0
    %v784 = vadd.f32 0.0, %v783
    %v785 = vpop.f32.mrf.mxu0
    %786 = vmatprep.mubr.f32.mxu0 0.0
    %787 = vmatmul.mubr.f32.gmra.mxu0 %v702
    %v788 = vpop.f32.mrf.mxu0
    %v789 = vadd.f32 0.0, %v788
    %v790 = vpop.f32.mrf.mxu0
    %791 = vmatprep.mubr.f32.mxu0 0.0
    %792 = vmatmul.mubr.f32.gmra.mxu0 %v703
    %v793 = vpop.f32.mrf.mxu0
    %v794 = vadd.f32 0.0, %v793
    %v795 = vpop.f32.mrf.mxu0
    %796 = vmatprep.mubr.f32.mxu0 0.0
    %797 = vmatmul.mubr.f32.gmra.mxu0 %v704
    %v798 = vpop.f32.mrf.mxu0
    %v799 = vadd.f32 0.0, %v798
    %v800 = vpop.f32.mrf.mxu0
    %801 = vmatprep.mubr.f32.mxu0 0.0
    %802 = vmatmul.mubr.f32.gmra.mxu0 %v705
    %v803 = vpop.f32.mrf.mxu0
    %v804 = vadd.f32 0.0, %v803
    %v805 = vpop.f32.mrf.mxu0
    %806 = vmatprep.mubr.f32.mxu0 0.0
    %807 = vmatmul.mubr.f32.gmra.mxu0 %v706
    %v808 = vpop.f32.mrf.mxu0
    %v809 = vadd.f32 0.0, %v808
    %v810 = vpop.f32.mrf.mxu0
    %811 = vmatprep.mubr.f32.mxu0 0.0
    %812 = vmatmul.mubr.f32.gmra.mxu0 %v707
    %v813 = vpop.f32.mrf.mxu0
    %v814 = vadd.f32 0.0, %v813
    %v815 = vpop.f32.mrf.mxu0
    %816 = vmatprep.mubr.f32.mxu0 0.0
    %817 = vmatmul.mubr.f32.gmra.mxu0 %v708
    %v818 = vpop.f32.mrf.mxu0
    %v819 = vadd.f32 0.0, %v818
    %v820 = vpop.f32.mrf.mxu0
    %821 = vmatprep.mubr.f32.mxu0 0.0
    %822 = vmatmul.mubr.f32.gmra.mxu0 %v709
    %v823 = vpop.f32.mrf.mxu0
    %v824 = vadd.f32 0.0, %v823
    %v825 = vpop.f32.mrf.mxu0
    %826 = vmatprep.mubr.f32.mxu0 0.0
    %827 = vmatmul.mubr.f32.gmra.mxu0 %v710
    %v828 = vpop.f32.mrf.mxu0
    %v829 = vadd.f32 0.0, %v828
    %v830 = vpop.f32.mrf.mxu0
    %831 = vmatprep.mubr.f32.mxu0 0.0
    %832 = vmatmul.mubr.f32.gmra.mxu0 %v711
    %v833 = vpop.f32.mrf.mxu0
    %v834 = vadd.f32 0.0, %v833
    %v835 = vpop.f32.mrf.mxu0
    %836 = vmatprep.mubr.f32.mxu0 0.0
    %837 = vmatmul.mubr.f32.gmra.mxu0 %v712
    %v838 = vpop.f32.mrf.mxu0
    %v839 = vadd.f32 0.0, %v838
    %v840 = vpop.f32.mrf.mxu0
    %841 = vmatprep.mubr.f32.mxu0 0.0
    %842 = vmatmul.mubr.f32.gmra.mxu0 %v713
    %v843 = vpop.f32.mrf.mxu0
    %v844 = vadd.f32 0.0, %v843
    %v845 = vpop.f32.mrf.mxu0
    %846 = vmatprep.mubr.f32.mxu0 0.0
    %847 = vmatmul.mubr.f32.gmra.mxu0 %v714
    %v848 = vpop.f32.mrf.mxu0
    %v849 = vadd.f32 0.0, %v848
    %v850 = vpop.f32.mrf.mxu0
    %851 = vmatprep.mubr.f32.mxu0 0.0
    %852 = vmatmul.mubr.f32.gmra.mxu0 %v715
    %v853 = vpop.f32.mrf.mxu0
    %v854 = vadd.f32 0.0, %v853
    %v855 = vpop.f32.mrf.mxu0
    %856 = vmatprep.mubr.f32.mxu0 0.0
    %857 = vmatmul.mubr.f32.gmra.mxu0 %v716
    %v858 = vpop.f32.mrf.mxu0
    %v859 = vadd.f32 0.0, %v858
    %v860 = vpop.f32.mrf.mxu0
    %861 = vdwg.mxu0
    %862 = vst [vmem:[#allocation8] sm:$0xff] %v784
    %863 = vst [vmem:[#allocation8 + $0x8] sm:$0xff] %v789
    %864 = vst [vmem:[#allocation8 + $0x10] sm:$0xff] %v794
    %865 = vst [vmem:[#allocation8 + $0x18] sm:$0xff] %v799
    %866 = vst [vmem:[#allocation8 + $0x20] sm:$0xff] %v804
    %867 = vst [vmem:[#allocation8 + $0x28] sm:$0xff] %v809
    %868 = vst [vmem:[#allocation8 + $0x30] sm:$0xff] %v814
    %869 = vst [vmem:[#allocation8 + $0x38] sm:$0xff] %v819
    %870 = vst [vmem:[#allocation8 + $0x40] sm:$0xff] %v824
    %871 = vst [vmem:[#allocation8 + $0x48] sm:$0xff] %v829
    %872 = vst [vmem:[#allocation8 + $0x50] sm:$0xff] %v834
    %873 = vst [vmem:[#allocation8 + $0x58] sm:$0xff] %v839
    %874 = vst [vmem:[#allocation8 + $0x60] sm:$0xff] %v844
    %875 = vst [vmem:[#allocation8 + $0x68] sm:$0xff] %v849
    %876 = vst [vmem:[#allocation8 + $0x70] sm:$0xff] %v854
    %877 = vst [vmem:[#allocation8 + $0x78] sm:$0xff] %v859
    %v878 = vsub.f32 %v784, %v52
    %v879 = vsub.f32 %v789, %v53
    %v880 = vsub.f32 %v794, %v54
    %v881 = vsub.f32 %v799, %v55
    %v882 = vsub.f32 %v804, %v56
    %v883 = vsub.f32 %v809, %v57
    %v884 = vsub.f32 %v814, %v58
    %v885 = vsub.f32 %v819, %v59
    %v886 = vsub.f32 %v824, %v60
    %v887 = vsub.f32 %v829, %v61
    %v888 = vsub.f32 %v834, %v62
    %v889 = vsub.f32 %v839, %v63
    %v890 = vsub.f32 %v844, %v64
    %v891 = vsub.f32 %v849, %v65
    %v892 = vsub.f32 %v854, %v66
    %v893 = vsub.f32 %v859, %v67
    %v894 = vmul.f32 %v878, %v878
    %v895 = vmul.f32 %v879, %v879
    %v896 = vmul.f32 %v880, %v880
    %v897 = vmul.f32 %v881, %v881
    %v898 = vmul.f32 %v882, %v882
    %v899 = vmul.f32 %v883, %v883
    %v900 = vmul.f32 %v884, %v884
    %v901 = vmul.f32 %v885, %v885
    %v902 = vmul.f32 %v886, %v886
    %v903 = vmul.f32 %v887, %v887
    %v904 = vmul.f32 %v888, %v888
    %v905 = vmul.f32 %v889, %v889
    %v906 = vmul.f32 %v890, %v890
    %v907 = vmul.f32 %v891, %v891
    %v908 = vmul.f32 %v892, %v892
    %v909 = vmul.f32 %v893, %v893
    %vm910 = vcmp.lt.s32.totalorder %v363, 64
    %v911 = vsel %vm910, %v894, 0.0
    %v912 = vsel %vm910, %v895, 0.0
    %v913 = vsel %vm910, %v896, 0.0
    %v914 = vsel %vm910, %v897, 0.0
    %v915 = vsel %vm910, %v898, 0.0
    %v916 = vsel %vm910, %v899, 0.0
    %v917 = vsel %vm910, %v900, 0.0
    %v918 = vsel %vm910, %v901, 0.0
    %v919 = vsel %vm910, %v902, 0.0
    %v920 = vsel %vm910, %v903, 0.0
    %v921 = vsel %vm910, %v904, 0.0
    %v922 = vsel %vm910, %v905, 0.0
    %v923 = vsel %vm910, %v906, 0.0
    %v924 = vsel %vm910, %v907, 0.0
    %v925 = vsel %vm910, %v908, 0.0
    %v926 = vsel %vm910, %v909, 0.0
    %v927 = vadd.f32 %v911, %v912
    %v928 = vadd.f32 %v927, %v913
    %v929 = vadd.f32 %v928, %v914
    %v930 = vadd.f32 %v929, %v915
    %v931 = vadd.f32 %v930, %v916
    %v932 = vadd.f32 %v931, %v917
    %v933 = vadd.f32 %v932, %v918
    %v934 = vadd.f32 %v933, %v919
    %v935 = vadd.f32 %v934, %v920
    %v936 = vadd.f32 %v935, %v921
    %v937 = vadd.f32 %v936, %v922
    %v938 = vadd.f32 %v937, %v923
    %v939 = vadd.f32 %v938, %v924
    %v940 = vadd.f32 %v939, %v925
    %v941 = vadd.f32 %v940, %v926
    %942 = vadd.xlane.f32.xlu0 %v941
    %v943 = vpop.xlane.xlu0 %942
    %v944 = vrot.slane %v943, 4
    %v945 = vadd.f32 %v943, %v944
    %v946 = vrot.slane %v945, 2
    %v947 = vadd.f32 %v945, %v946
    %v948 = vrot.slane %v947, 1
    %v949 = vadd.f32 %v947, %v948
    %s950 = vtos %v949
    %vm951 = vcmp.ge.s32.totalorder %v363, 64
    %v952 = vsel %vm951, %v894, 0.0
    %v953 = vsel %vm951, %v895, 0.0
    %v954 = vsel %vm951, %v896, 0.0
    %v955 = vsel %vm951, %v897, 0.0
    %v956 = vsel %vm951, %v898, 0.0
    %v957 = vsel %vm951, %v899, 0.0
    %v958 = vsel %vm951, %v900, 0.0
    %v959 = vsel %vm951, %v901, 0.0
    %v960 = vsel %vm951, %v902, 0.0
    %v961 = vsel %vm951, %v903, 0.0
    %v962 = vsel %vm951, %v904, 0.0
    %v963 = vsel %vm951, %v905, 0.0
    %v964 = vsel %vm951, %v906, 0.0
    %v965 = vsel %vm951, %v907, 0.0
    %v966 = vsel %vm951, %v908, 0.0
    %v967 = vsel %vm951, %v909, 0.0
    %v968 = vadd.f32 %v952, %v953
    %v969 = vadd.f32 %v968, %v954
    %v970 = vadd.f32 %v969, %v955
    %v971 = vadd.f32 %v970, %v956
    %v972 = vadd.f32 %v971, %v957
    %v973 = vadd.f32 %v972, %v958
    %v974 = vadd.f32 %v973, %v959
    %v975 = vadd.f32 %v974, %v960
    %v976 = vadd.f32 %v975, %v961
    %v977 = vadd.f32 %v976, %v962
    %v978 = vadd.f32 %v977, %v963
    %v979 = vadd.f32 %v978, %v964
    %v980 = vadd.f32 %v979, %v965
    %v981 = vadd.f32 %v980, %v966
    %v982 = vadd.f32 %v981, %v967
    %983 = vadd.xlane.f32.xlu0 %v982
    %v984 = vpop.xlane.xlu0 %983
    %v985 = vrot.slane %v984, 4
    %v986 = vadd.f32 %v984, %v985
    %v987 = vrot.slane %v986, 2
    %v988 = vadd.f32 %v986, %v987
    %v989 = vrot.slane %v988, 1
    %v990 = vadd.f32 %v988, %v989
    %s991 = vtos %v990
    %s992 = sld [smem:[#allocation9]]
    %s993 = sadd.f32 %s992, %s991
    %s994 = scalar_lea.smem [#allocation9], 0
    %995 = sst [smem:[%s994]] %s993
    %s996 = sld [smem:[#allocation9 + $0x1]]
    %s997 = sadd.f32 %s996, %s950
    %s998 = scalar_lea.smem [#allocation9], 1
    %999 = sst [smem:[%s998]] %s997
    // Predicated region
    $region22: #{tpu_custom_call.1} parent=1 // pred_check
      %p1000 = pneg %p44
    $region23: #{tpu_custom_call.1} parent=1 // pred_check_branch
      %1002 = sbr.rel (%p1000) target = $region25
    $region24: #{tpu_custom_call.1} parent=1 // pred_region
      %s1003 = sld [smem:[#allocation9]]
      %s1004 = smul.f32 %s1003, 0.00012207031
      %1005 = sst [smem:[%s994]] %s1004
      %s1006 = sld [smem:[#allocation9 + $0x1]]
      %s1007 = smul.f32 %s1006, 0.00012207031
      %1008 = sst [smem:[%s998]] %s1007
    $region25: #{tpu_custom_call.1} parent=1 // pred_fallthru
      _
    // Predicated region
    $region26: #{tpu_custom_call.1} parent=1 // pred_check
      _
    $region27: #{tpu_custom_call.1} parent=1 // pred_check_branch
      %1010 = sbr.rel (0) target = $region29
    $region28: #{tpu_custom_call.1} parent=1 // pred_region
      %s1012 = ssub.s32 2048, 2048
      %1013 = vsyncadd [#allocation4], %s1012
      %s1014 = sshll.u32 [#allocation8], 4
      %s1015 = int_to_ptr.vmem [resolvable:$true] %s1014
      %1020 = dma.vmem_to_hbm [thread:$0]  %s1015, 2048, %s2, [#allocation4], 128, 128, 8
    $region29: #{tpu_custom_call.1} parent=1 // pred_fallthru
      _
    // Predicated region
    $region30: #{tpu_custom_call.1} parent=1 // pred_check
      _
    $region31: #{tpu_custom_call.1} parent=1 // pred_check_branch
      %1022 = sbr.rel (0) target = $region33
    $region32: #{tpu_custom_call.1} parent=1 // pred_region
      _
    $region33: #{tpu_custom_call.1} parent=1 // pred_fallthru
      _
    // Predicated region
    $region34: #{tpu_custom_call.1} parent=1 // pred_check
      _
    $region35: #{tpu_custom_call.1} parent=1 // pred_check_branch
      %1024 = sbr.rel (0) target = $region37
    $region36: #{tpu_custom_call.1} parent=1 // pred_region
      %s1026 = ssub.s32 16, 16
      %1027 = vsyncadd [#allocation5], %s1026
      %1030 = dma.smem_to_hbm [#allocation9], 16, %s4, [#allocation5]
    $region37: #{tpu_custom_call.1} parent=1 // pred_fallthru
      _
    // Predicated region
    $region38: #{tpu_custom_call.1} parent=1 // pred_check
      _
    $region39: #{tpu_custom_call.1} parent=1 // pred_check_branch
      %1032 = sbr.rel (0) target = $region41
    $region40: #{tpu_custom_call.1} parent=1 // pred_region
      %1033 = dma.done [#allocation4], 2048
    $region41: #{tpu_custom_call.1} parent=1 // pred_fallthru
      _
    // Predicated region
    $region42: #{tpu_custom_call.1} parent=1 // pred_check
      _
    $region43: #{tpu_custom_call.1} parent=1 // pred_check_branch
      %1035 = sbr.rel (0) target = $region45
    $region44: #{tpu_custom_call.1} parent=1 // pred_region
      _
    $region45: #{tpu_custom_call.1} parent=1 // pred_fallthru
      _
    // Predicated region
    $region46: #{tpu_custom_call.1} parent=1 // pred_check
      _
    $region47: #{tpu_custom_call.1} parent=1 // pred_check_branch
      %1037 = sbr.rel (0) target = $region49
    $region48: #{tpu_custom_call.1} parent=1 // pred_region
      %1038 = dma.done [#allocation5], 16
    $region49: #{tpu_custom_call.1} parent=1 // pred_fallthru
      _
    %1039 = sfence
    %1040 = vsyncpa [#allocation3], 1
    %1041 = vsyncpa [#allocation7], 1
    %1042 = vsyncpa [#allocation4], 1
    %1043 = vsyncpa [#allocation5], 1

</llo_original>
